<compile_context>
chip_gen: v7x
topology: tpu7x:2x2x1
jax: 0.10.0
libtpu: 0.0.40
codegen_flags: <defaults>
</compile_context>

<pallas_src>
import jax
import jax.numpy as jnp
from jax.experimental import pallas as pl
from jax.experimental.pallas import tpu as pltpu


def _fused_conv1x1_kernel(x_ref, w_ref, b_ref, o_ref):
    # x_ref: (C_in,  TM)   pixel tile, pixels on the lane axis
    # w_ref: (C_out, C_in) fused 1x1 conv weight
    # b_ref: (C_out, 1)    fused bias
    # o_ref: (C_out, TM)   lane-dense output tile
    y = jnp.dot(w_ref[...], x_ref[...], preferred_element_type=jnp.float32)
    y = y + b_ref[...]
    o_ref[...] = y.astype(o_ref.dtype)


def _fused_conv1x1_batched_kernel(x_ref, w_ref, b_ref, o_ref):
    # Whole problem in one block (small-workload path).
    # x_ref: (N, C_in, HW), o_ref: (N, C_out, HW)
    w = w_ref[...]
    b = b_ref[...]
    n = x_ref.shape[0]
    for i in range(n):  # N is small on this path; static unroll.
        y = jnp.dot(w, x_ref[i], preferred_element_type=jnp.float32) + b
        o_ref[i] = y.astype(o_ref.dtype)


def _pad8(c):
    return -(-c // 8) * 8


def _choose_tile(hw, max_tile):
    """Full HW if it fits, else the largest multiple of 128 <= max_tile.
    Ragged last block is handled by cdiv tiling (no divides-HW requirement)."""
    if hw <= max_tile:
        return hw
    return max(128, (max_tile // 128) * 128)


def _vmem_limit_bytes(footprint):
    # Explicit scoped-VMEM budget: covers the double-buffered tiles with
    # margin, never exceeds what is safe on every generation (v7x = 64 MiB
    # physical per TC).
    return int(min(max(footprint + (4 << 20), 32 << 20), 48 << 20))


def model_forward(x_nchw, w1, b1, w2, b2, *, max_tile=65536,
                  small_limit=65536, out_dtype=None):
    """x_nchw: (N, 3, H, W).  Returns (N, 12, H, W) in out_dtype (default: input dtype).

    w1: (32, 3)   torch Conv2d(3,32,1) weight squeezed  (C_out, C_in)
    b1: (32,)
    w2: (12, 32)  torch Conv2d(32,12,1) weight squeezed
    b2: (12,)
    """
    N, C_in, H, W = x_nchw.shape
    C_out = w2.shape[0]
    HW = H * W
    out_dtype = x_nchw.dtype if out_dtype is None else out_dtype

    # Fuse conv1 -> (dropout=id) -> conv2 into a single 3->12 conv.
    w_eff = jnp.dot(w2, w1)                           # (C_out, C_in)
    b_eff = (jnp.dot(w2, b1) + b2).reshape(C_out, 1)  # (C_out, 1)

    # Free contiguous reshape: NCHW -> (N, C, H*W). No transposes needed.
    x_flat = x_nchw.reshape(N, C_in, HW)
    isz_in = x_flat.dtype.itemsize
    isz_out = jnp.dtype(out_dtype).itemsize

    cost = pl.CostEstimate(
        flops=2 * N * HW * C_out * C_in,
        transcendentals=0,
        bytes_accessed=N * HW * (C_in * isz_in + C_out * isz_out))

    # --- Small-workload path: one grid step, no per-step pipeline overhead ---
    if N * HW <= small_limit:
        footprint = 2 * N * HW * (_pad8(C_in) * isz_in + _pad8(C_out) * isz_out)
        out_flat = pl.pallas_call(
            _fused_conv1x1_batched_kernel,
            out_shape=jax.ShapeDtypeStruct((N, C_out, HW), out_dtype),
            grid_spec=pltpu.PrefetchScalarGridSpec(
                num_scalar_prefetch=0,
                grid=(1,),
                in_specs=[
                    pl.BlockSpec((N, C_in, HW), lambda i: (0, 0, 0)),
                    pl.BlockSpec((C_out, C_in), lambda i: (0, 0)),
                    pl.BlockSpec((C_out, 1), lambda i: (0, 0)),
                ],
                out_specs=pl.BlockSpec((N, C_out, HW), lambda i: (0, 0, 0)),
            ),
            compiler_params=pltpu.CompilerParams(
                dimension_semantics=("arbitrary",),
                vmem_limit_bytes=_vmem_limit_bytes(footprint)),
            cost_estimate=cost,
        )(x_flat, w_eff, b_eff)
        return out_flat.reshape(N, C_out, H, W)

    # --- Main path: large lane-dense pixel tiles, ragged cdiv grid ---
    tile_m = _choose_tile(HW, max_tile)
    num_tiles = pl.cdiv(HW, tile_m)
    footprint = 2 * tile_m * (_pad8(C_in) * isz_in + _pad8(C_out) * isz_out)

    out_flat = pl.pallas_call(
        _fused_conv1x1_kernel,
        out_shape=jax.ShapeDtypeStruct((N, C_out, HW), out_dtype),
        grid_spec=pltpu.PrefetchScalarGridSpec(
            num_scalar_prefetch=0,
            grid=(N, num_tiles),
            in_specs=[
                # batch dim squeezed out of the kernel view
                pl.BlockSpec((None, C_in, tile_m), lambda n, t: (n, 0, t)),
                pl.BlockSpec((C_out, C_in), lambda n, t: (0, 0)),
                pl.BlockSpec((C_out, 1), lambda n, t: (0, 0)),
            ],
            out_specs=pl.BlockSpec((None, C_out, tile_m), lambda n, t: (n, 0, t)),
        ),
        compiler_params=pltpu.CompilerParams(
            dimension_semantics=("parallel", "parallel"),
            vmem_limit_bytes=_vmem_limit_bytes(footprint)),
        cost_estimate=cost,
    )(x_flat, w_eff, b_eff)

    return out_flat.reshape(N, C_out, H, W)


def _reference(x_nchw, w1, b1, w2, b2):
    # Pure-JAX reference of the unfused math (eval-mode dropout) in NCHW.
    h = jnp.einsum("nchw,oc->nohw", x_nchw, w1) + b1[None, :, None, None]
    y = jnp.einsum("nchw,oc->nohw", h, w2) + b2[None, :, None, None]
    return y


if __name__ == "__main__":
    key = jax.random.PRNGKey(0)
    k_x, k_w1, k_b1, k_w2, k_b2 = jax.random.split(key, 5)

    # Small shapes consistent with the module: batch=2, C_in=3, spatial=16.
    N, C_in, H, W = 2, 3, 16, 16
    C_mid, C_out = 32, 12

    x = jax.random.normal(k_x, (N, C_in, H, W), dtype=jnp.float32)

    # Deterministic parameter init (uniform, roughly matching torch fan-in scale).
    lim1 = 1.0 / (C_in ** 0.5)
    lim2 = 1.0 / (C_mid ** 0.5)
    w1 = jax.random.uniform(k_w1, (C_mid, C_in), jnp.float32, -lim1, lim1)
    b1 = jax.random.uniform(k_b1, (C_mid,), jnp.float32, -lim1, lim1)
    w2 = jax.random.uniform(k_w2, (C_out, C_mid), jnp.float32, -lim2, lim2)
    b2 = jax.random.uniform(k_b2, (C_out,), jnp.float32, -lim2, lim2)

    ref = _reference(x, w1, b1, w2, b2)

    # Path 1: small-workload single-block path (default for this shape).
    out = jax.block_until_ready(model_forward(x, w1, b1, w2, b2))
    assert out.shape == (N, C_out, H, W), out.shape
    assert jnp.allclose(out, ref, atol=1e-4, rtol=1e-4), "small path mismatch"

    # Path 2: pixel-tiled path (force tiles so the 2D grid is exercised).
    out_t = jax.block_until_ready(
        model_forward(x, w1, b1, w2, b2, max_tile=128, small_limit=0))
    assert jnp.allclose(out_t, ref, atol=1e-4, rtol=1e-4), "tiled path mismatch"

    # Path 3: ragged last tile (HW = 300 not a multiple of the 128 tile).
    x_r = jax.random.normal(k_x, (1, C_in, 20, 15), dtype=jnp.float32)
    ref_r = _reference(x_r, w1, b1, w2, b2)
    out_r = jax.block_until_ready(
        model_forward(x_r, w1, b1, w2, b2, max_tile=128, small_limit=0))
    assert jnp.allclose(out_r, ref_r, atol=1e-4, rtol=1e-4), "ragged path mismatch"

    print("KERNEL_OK")
</pallas_src>

<mosaic_0001>
module attributes {stable_mosaic.version = 11 : i64} {
  func.func @_fused_conv1x1_batched_kernel(%arg0: i32, %arg1: memref<2x3x256xf32, #tpu.memory_space<vmem>>, %arg2: memref<12x3xf32, #tpu.memory_space<vmem>>, %arg3: memref<12x1xf32, #tpu.memory_space<vmem>>, %arg4: memref<2x12x256xf32, #tpu.memory_space<vmem>>) attributes {dimension_semantics = [#tpu.dimension_semantics<arbitrary>], iteration_bounds = array<i64: 1>, scalar_prefetch = 0 : i64, scratch_operands = 0 : i64, tpu.core_type = #tpu.core_type<tc>, window_params = [{pipeline_mode = #tpu.pipeline_mode<synchronous>, transform_indices = @transform_0, window_bounds = array<i64: 2, 3, 256>}, {pipeline_mode = #tpu.pipeline_mode<synchronous>, transform_indices = @transform_1, window_bounds = array<i64: 12, 3>}, {pipeline_mode = #tpu.pipeline_mode<synchronous>, transform_indices = @transform_2, window_bounds = array<i64: 12, 1>}, {pipeline_mode = #tpu.pipeline_mode<synchronous>, transform_indices = @transform_3, window_bounds = array<i64: 2, 12, 256>}]} {
    %c0 = arith.constant 0 : index
    %c0_0 = arith.constant 0 : index
    %0 = vector.load %arg2[%c0, %c0_0] : memref<12x3xf32, #tpu.memory_space<vmem>>, vector<12x3xf32>
    %c0_1 = arith.constant 0 : index
    %c0_2 = arith.constant 0 : index
    %1 = vector.load %arg3[%c0_1, %c0_2] : memref<12x1xf32, #tpu.memory_space<vmem>>, vector<12x1xf32>
    %c0_3 = arith.constant 0 : index
    %c0_4 = arith.constant 0 : index
    %c0_5 = arith.constant 0 : index
    %2 = vector.load %arg1[%c0_3, %c0_4, %c0_5] : memref<2x3x256xf32, #tpu.memory_space<vmem>>, vector<1x3x256xf32>
    %3 = vector.shape_cast %2 : vector<1x3x256xf32> to vector<3x256xf32>
    %cst = arith.constant dense<0.000000e+00> : vector<12x256xf32>
    %4 = tpu.matmul %0, %3, %cst {dimension_numbers = #tpu.dot_dimension_numbers<[1], [0], [0], [1], [0, 0, 1, 1], [], []>} : vector<12x3xf32>, vector<3x256xf32>, vector<12x256xf32> -> vector<12x256xf32>
    %5 = vector.broadcast %1 : vector<12x1xf32> to vector<12x256xf32>
    %6 = arith.addf %4, %5 : vector<12x256xf32>
    %c0_6 = arith.constant 0 : index
    %c0_7 = arith.constant 0 : index
    %c0_8 = arith.constant 0 : index
    %7 = vector.load %arg4[%c0_6, %c0_7, %c0_8] : memref<2x12x256xf32, #tpu.memory_space<vmem>>, vector<1x12x256xf32>
    %8 = vector.shape_cast %7 : vector<1x12x256xf32> to vector<12x256xf32>
    %9 = vector.shape_cast %6 : vector<12x256xf32> to vector<1x12x256xf32>
    tpu.vector_store %arg4[%c0_6, %c0_7, %c0_8], %9 {strides = array<i32>} : memref<2x12x256xf32, #tpu.memory_space<vmem>>, vector<1x12x256xf32>,
    %c1 = arith.constant 1 : index
    %c0_9 = arith.constant 0 : index
    %c0_10 = arith.constant 0 : index
    %10 = vector.load %arg1[%c1, %c0_9, %c0_10] : memref<2x3x256xf32, #tpu.memory_space<vmem>>, vector<1x3x256xf32>
    %11 = vector.shape_cast %10 : vector<1x3x256xf32> to vector<3x256xf32>
    %cst_11 = arith.constant dense<0.000000e+00> : vector<12x256xf32>
    %12 = tpu.matmul %0, %11, %cst_11 {dimension_numbers = #tpu.dot_dimension_numbers<[1], [0], [0], [1], [0, 0, 1, 1], [], []>} : vector<12x3xf32>, vector<3x256xf32>, vector<12x256xf32> -> vector<12x256xf32>
    %13 = vector.broadcast %1 : vector<12x1xf32> to vector<12x256xf32>
    %14 = arith.addf %12, %13 : vector<12x256xf32>
    %c1_12 = arith.constant 1 : index
    %c0_13 = arith.constant 0 : index
    %c0_14 = arith.constant 0 : index
    %15 = vector.load %arg4[%c1_12, %c0_13, %c0_14] : memref<2x12x256xf32, #tpu.memory_space<vmem>>, vector<1x12x256xf32>
    %16 = vector.shape_cast %15 : vector<1x12x256xf32> to vector<12x256xf32>
    %17 = vector.shape_cast %14 : vector<12x256xf32> to vector<1x12x256xf32>
    tpu.vector_store %arg4[%c1_12, %c0_13, %c0_14], %17 {strides = array<i32>} : memref<2x12x256xf32, #tpu.memory_space<vmem>>, vector<1x12x256xf32>,
    return
  }
  func.func @transform_0(%arg0: i32) -> (i32, i32, i32) {
    %c0_i32 = arith.constant 0 : i32
    %c0_i32_0 = arith.constant 0 : i32
    %c0_i32_1 = arith.constant 0 : i32
    %c0_i32_2 = arith.constant 0 : i32
    return %c0_i32, %c0_i32_0, %c0_i32_1 : i32, i32, i32
  }
  func.func @transform_1(%arg0: i32) -> (i32, i32) {
    %c0_i32 = arith.constant 0 : i32
    %c0_i32_0 = arith.constant 0 : i32
    %c0_i32_1 = arith.constant 0 : i32
    return %c0_i32, %c0_i32_0 : i32, i32
  }
  func.func @transform_2(%arg0: i32) -> (i32, i32) {
    %c0_i32 = arith.constant 0 : i32
    %c0_i32_0 = arith.constant 0 : i32
    %c0_i32_1 = arith.constant 0 : i32
    return %c0_i32, %c0_i32_0 : i32, i32
  }
  func.func @transform_3(%arg0: i32) -> (i32, i32, i32) {
    %c0_i32 = arith.constant 0 : i32
    %c0_i32_0 = arith.constant 0 : i32
    %c0_i32_1 = arith.constant 0 : i32
    %c0_i32_2 = arith.constant 0 : i32
    return %c0_i32, %c0_i32_0, %c0_i32_1 : i32, i32, i32
  }
}

</mosaic_0001>

<llo_original>
// kernel: tpu_custom_call.1
$region0: #{tpu_custom_call.1}
  #allocation0 [shape = 'u32[]', space=smem, size = 0x4, offset = 0x4, fixed_abs, tag = 'smem constant byte address 0x4 - core index']
  #allocation1 [shape = 'u32[144,128]{1,0:T(1,128)}', space=vmem, size = 0x12000, scoped, tag = 'internal scratch']
  %s0 = inlined_call_operand.vmem [shape: f32[2,3,256], index: 0, kind: input, shape index: {}]
  %s1 = inlined_call_operand.vmem [shape: f32[12,3], index: 1, kind: input, shape index: {}]
  %s2 = inlined_call_operand.vmem [shape: f32[12,1], index: 2, kind: input, shape index: {}]
  %s3 = inlined_call_operand.vmem [shape: f32[2,12,256], index: 3, kind: output, shape index: {}]
  %s4 = sld [smem:[#allocation0]]
  $region22: #{tpu_custom_call.1} parent=0
    _
  %s6 = ssub.s32 1, %s4
  %s7 = scalar_select 0, %s6, %s4
  // Predicated region
  $region2: #{tpu_custom_call.1} parent=0 // pred_check
    _
  $region3: #{tpu_custom_call.1} parent=0 // pred_check_branch
    %9 = sbr.rel (0) target = $region5
  $region4: #{tpu_custom_call.1} parent=0 // pred_region
    _
  $region5: #{tpu_custom_call.1} parent=0 // pred_fallthru
    _
  // Predicated region
  $region6: #{tpu_custom_call.1} parent=0 // pred_check
    _
  $region7: #{tpu_custom_call.1} parent=0 // pred_check_branch
    %11 = sbr.rel (0) target = $region9
  $region8: #{tpu_custom_call.1} parent=0 // pred_region
    _
  $region9: #{tpu_custom_call.1} parent=0 // pred_fallthru
    _
  // Predicated region
  $region10: #{tpu_custom_call.1} parent=0 // pred_check
    _
  $region11: #{tpu_custom_call.1} parent=0 // pred_check_branch
    %13 = sbr.rel (0) target = $region13
  $region12: #{tpu_custom_call.1} parent=0 // pred_region
    _
  $region13: #{tpu_custom_call.1} parent=0 // pred_fallthru
    _
  %v14 = vld [vmem:[%s1] sm:$0xff]
  %v15 = vld [vmem:[%s1 + $0x8] sm:$0xf]
  %v16 = vld [vmem:[%s2] sm:$0xff]
  %v17 = vld [vmem:[%s2 + $0x8] sm:$0xf]
  %v18 = vld [vmem:[%s0] sm:$0x77]
  %20 = vset.pattern.permute.xlu0 0
  %21 = vperm.xlu0 %20, %v16
  %v22 = vpop.permute.xlu0 %21
  %25 = vset.pattern.permute.xlu0 0
  %26 = vperm.xlu0 %25, %v17
  %v27 = vpop.permute.xlu0 %26
  %v30 = vcombine.high %v18, %v18
  %vm31 = vcmask 23552
  %v33 = vsel %vm31, %v14, 0
  %v36 = vsel %vm31, %v15, 0
  %vm38 = vcmask 1042432
  %v39 = vsel %vm38, %v18, 0
  %v41 = vsel %vm38, %v30, 0
  %43 = vmatprep.subr.mxu0 %v41
  %44 = vmatpush1.msra.mxu0 %v39
  %45 = vmatprep.subr.mxu0 0.0
  %46 = vmatpush1.msra.mxu0 0.0
  %47 = vmatprep.subr.mxu0 0.0
  %48 = vmatpush1.msra.mxu0 0.0
  %49 = vmatprep.subr.mxu0 0.0
  %50 = vmatpush1.msra.mxu0 0.0
  %51 = vmatprep.subr.mxu0 0.0
  %52 = vmatpush1.msra.mxu0 0.0
  %53 = vmatprep.subr.mxu0 0.0
  %54 = vmatpush1.msra.mxu0 0.0
  %55 = vmatprep.subr.mxu0 0.0
  %56 = vmatpush1.msra.mxu0 0.0
  %57 = vmatprep.subr.mxu0 0.0
  %58 = vmatpush1.msra.mxu0 0.0
  %59 = vmatprep.subr.mxu0 0.0
  %60 = vmatpush1.msra.mxu0 0.0
  %61 = vmatprep.subr.mxu0 0.0
  %62 = vmatpush1.msra.mxu0 0.0
  %63 = vmatprep.subr.mxu0 0.0
  %64 = vmatpush1.msra.mxu0 0.0
  %65 = vmatprep.subr.mxu0 0.0
  %66 = vmatpush1.msra.mxu0 0.0
  %67 = vmatprep.subr.mxu0 0.0
  %68 = vmatpush1.msra.mxu0 0.0
  %69 = vmatprep.subr.mxu0 0.0
  %70 = vmatpush1.msra.mxu0 0.0
  %71 = vmatprep.subr.mxu0 0.0
  %72 = vmatpush1.msra.mxu0 0.0
  %73 = vmatprep.subr.mxu0 0.0
  %74 = vmatpush1.msra.mxu0 0.0
  %75 = vmatprep.subr.mxu0 0.0
  %76 = vmatpush1.msra.mxu0 0.0
  %77 = vmatprep.subr.mxu0 0.0
  %78 = vmatpush1.msra.mxu0 0.0
  %79 = vmatprep.subr.mxu0 0.0
  %80 = vmatpush1.msra.mxu0 0.0
  %81 = vmatprep.subr.mxu0 0.0
  %82 = vmatpush1.msra.mxu0 0.0
  %83 = vmatprep.subr.mxu0 0.0
  %84 = vmatpush1.msra.mxu0 0.0
  %85 = vmatprep.subr.mxu0 0.0
  %86 = vmatpush1.msra.mxu0 0.0
  %87 = vmatprep.subr.mxu0 0.0
  %88 = vmatpush1.msra.mxu0 0.0
  %89 = vmatprep.subr.mxu0 0.0
  %90 = vmatpush1.msra.mxu0 0.0
  %91 = vmatprep.subr.mxu0 0.0
  %92 = vmatpush1.msra.mxu0 0.0
  %93 = vmatprep.subr.mxu0 0.0
  %94 = vmatpush1.msra.mxu0 0.0
  %95 = vmatprep.subr.mxu0 0.0
  %96 = vmatpush1.msra.mxu0 0.0
  %97 = vmatprep.subr.mxu0 0.0
  %98 = vmatpush1.msra.mxu0 0.0
  %99 = vmatprep.subr.mxu0 0.0
  %100 = vmatpush1.msra.mxu0 0.0
  %101 = vmatprep.subr.mxu0 0.0
  %102 = vmatpush1.msra.mxu0 0.0
  %103 = vmatprep.subr.mxu0 0.0
  %104 = vmatpush1.msra.mxu0 0.0
  %105 = vmatprep.subr.mxu0 0.0
  %106 = vmatpush1.msra.mxu0 0.0
  %107 = vmatprep.mubr.f32.mxu0 0.0
  %108 = vmatmul.mubr.f32.gmra.mrb[0].mxu0 %v33
  %v109 = vpop.f32.mrb[0].mxu0
  %v110 = vadd.f32 %v22, %v109
  %v111 = vpop.f32.mrb[0].mxu0
  %v112 = vadd.f32 %v22, %v111
  %113 = vmatprep.mubr.f32.mxu0 0.0
  %114 = vmatmul.mubr.f32.gmra.mrb[0].mxu0 %v36
  %v115 = vpop.f32.mrb[0].mxu0
  %v116 = vadd.f32 %v27, %v115
  %v117 = vpop.f32.mrb[0].mxu0
  %v118 = vadd.f32 %v27, %v117
  %119 = vdwg.mxu0
  %120 = vst [vmem:[%s3] sm:$0xff] %v110
  %121 = vst [vmem:[%s3 + $0x8] sm:$0xff] %v112
  %122 = vst [vmem:[%s3 + $0x10] sm:$0xf] %v116
  %123 = vst [vmem:[%s3 + $0x18] sm:$0xf] %v118
  %s124 = scalar_lea.vmem %s0, 8
  %v125 = vld [vmem:[%s124] sm:$0x77]
  %v127 = vcombine.high %v125, %v125
  %v128 = vsel %vm38, %v125, 0
  %v130 = vsel %vm38, %v127, 0
  %132 = vmatprep.subr.mxu0 %v130
  %133 = vmatpush1.msra.mxu0 %v128
  %134 = vmatprep.subr.mxu0 0.0
  %135 = vmatpush1.msra.mxu0 0.0
  %136 = vmatprep.subr.mxu0 0.0
  %137 = vmatpush1.msra.mxu0 0.0
  %138 = vmatprep.subr.mxu0 0.0
  %139 = vmatpush1.msra.mxu0 0.0
  %140 = vmatprep.subr.mxu0 0.0
  %141 = vmatpush1.msra.mxu0 0.0
  %142 = vmatprep.subr.mxu0 0.0
  %143 = vmatpush1.msra.mxu0 0.0
  %144 = vmatprep.subr.mxu0 0.0
  %145 = vmatpush1.msra.mxu0 0.0
  %146 = vmatprep.subr.mxu0 0.0
  %147 = vmatpush1.msra.mxu0 0.0
  %148 = vmatprep.subr.mxu0 0.0
  %149 = vmatpush1.msra.mxu0 0.0
  %150 = vmatprep.subr.mxu0 0.0
  %151 = vmatpush1.msra.mxu0 0.0
  %152 = vmatprep.subr.mxu0 0.0
  %153 = vmatpush1.msra.mxu0 0.0
  %154 = vmatprep.subr.mxu0 0.0
  %155 = vmatpush1.msra.mxu0 0.0
  %156 = vmatprep.subr.mxu0 0.0
  %157 = vmatpush1.msra.mxu0 0.0
  %158 = vmatprep.subr.mxu0 0.0
  %159 = vmatpush1.msra.mxu0 0.0
  %160 = vmatprep.subr.mxu0 0.0
  %161 = vmatpush1.msra.mxu0 0.0
  %162 = vmatprep.subr.mxu0 0.0
  %163 = vmatpush1.msra.mxu0 0.0
  %164 = vmatprep.subr.mxu0 0.0
  %165 = vmatpush1.msra.mxu0 0.0
  %166 = vmatprep.subr.mxu0 0.0
  %167 = vmatpush1.msra.mxu0 0.0
  %168 = vmatprep.subr.mxu0 0.0
  %169 = vmatpush1.msra.mxu0 0.0
  %170 = vmatprep.subr.mxu0 0.0
  %171 = vmatpush1.msra.mxu0 0.0
  %172 = vmatprep.subr.mxu0 0.0
  %173 = vmatpush1.msra.mxu0 0.0
  %174 = vmatprep.subr.mxu0 0.0
  %175 = vmatpush1.msra.mxu0 0.0
  %176 = vmatprep.subr.mxu0 0.0
  %177 = vmatpush1.msra.mxu0 0.0
  %178 = vmatprep.subr.mxu0 0.0
  %179 = vmatpush1.msra.mxu0 0.0
  %180 = vmatprep.subr.mxu0 0.0
  %181 = vmatpush1.msra.mxu0 0.0
  %182 = vmatprep.subr.mxu0 0.0
  %183 = vmatpush1.msra.mxu0 0.0
  %184 = vmatprep.subr.mxu0 0.0
  %185 = vmatpush1.msra.mxu0 0.0
  %186 = vmatprep.subr.mxu0 0.0
  %187 = vmatpush1.msra.mxu0 0.0
  %188 = vmatprep.subr.mxu0 0.0
  %189 = vmatpush1.msra.mxu0 0.0
  %190 = vmatprep.subr.mxu0 0.0
  %191 = vmatpush1.msra.mxu0 0.0
  %192 = vmatprep.subr.mxu0 0.0
  %193 = vmatpush1.msra.mxu0 0.0
  %194 = vmatprep.subr.mxu0 0.0
  %195 = vmatpush1.msra.mxu0 0.0
  %196 = vmatprep.mubr.f32.mxu0 0.0
  %197 = vmatmul.mubr.f32.gmra.mrb[0].mxu0 %v33
  %v198 = vpop.f32.mrb[0].mxu0
  %v199 = vadd.f32 %v22, %v198
  %v200 = vpop.f32.mrb[0].mxu0
  %v201 = vadd.f32 %v22, %v200
  %202 = vmatprep.mubr.f32.mxu0 0.0
  %203 = vmatmul.mubr.f32.gmra.mrb[0].mxu0 %v36
  %v204 = vpop.f32.mrb[0].mxu0
  %v205 = vadd.f32 %v27, %v204
  %v206 = vpop.f32.mrb[0].mxu0
  %v207 = vadd.f32 %v27, %v206
  %208 = vdwg.mxu0
  %s209 = scalar_lea.vmem %s3, 32
  %210 = vst [vmem:[%s209] sm:$0xff] %v199
  %211 = vst [vmem:[%s209 + $0x8] sm:$0xff] %v201
  %212 = vst [vmem:[%s209 + $0x10] sm:$0xf] %v205
  %213 = vst [vmem:[%s209 + $0x18] sm:$0xf] %v207
  // Predicated region
  $region14: #{tpu_custom_call.1} parent=0 // pred_check
    _
  $region15: #{tpu_custom_call.1} parent=0 // pred_check_branch
    %215 = sbr.rel (0) target = $region17
  $region16: #{tpu_custom_call.1} parent=0 // pred_region
    _
  $region17: #{tpu_custom_call.1} parent=0 // pred_fallthru
    _
  // Predicated region
  $region18: #{tpu_custom_call.1} parent=0 // pred_check
    _
  $region19: #{tpu_custom_call.1} parent=0 // pred_check_branch
    %217 = sbr.rel (0) target = $region21
  $region20: #{tpu_custom_call.1} parent=0 // pred_region
    _
  $region21: #{tpu_custom_call.1} parent=0 // pred_fallthru
    _

</llo_original>
